<compile_context>
chip_gen: v7x
topology: tpu7x:2x2x1
jax: 0.10.0
libtpu: 0.0.40
codegen_flags: <defaults>
</compile_context>

<pallas_src>
import numpy as np
import jax
import jax.numpy as jnp
from jax.experimental import pallas as pl
from jax.experimental.pallas import tpu as pltpu

# ----------------------------- problem sizes -----------------------------
N    = 2      # batch
C4   = 4      # in channels  (channel4)
C5   = 8      # out channels (channel5)
L    = 16     # input length
SC   = 4      # upsample scale factor
K    = 9      # conv-transpose kernel size
LO   = SC * L           # upsampled length             = 64
LOUT = LO + K - 1       # conv-transpose output length = 71
LOUT_PAD = 128          # lane-dense padded output length (multiple of 128)


# ------------- glue (host, once): fold upsample + pad + taps into A -------------
def build_fused_matrix(weight_np: np.ndarray) -> np.ndarray:
    """A[(ci,l), (co,t)] such that
         out[n, co, t] = relu( bias[co] + sum_{ci,l} x[n, ci, l] * A[(ci,l),(co,t)] )
    reproduces Upsample(scale=4, mode='linear', align_corners=False)
    followed by ConvTranspose1d(kernel_size=9, stride=1).
    weight_np: (C4, C5, K) in PyTorch ConvTranspose1d layout.
    Returns (C4*L, C5*LOUT_PAD) float32 (columns >= LOUT are zero)."""
    # Upsample matrix with the K-1 zero pad columns (both sides) already folded in.
    Upad = np.zeros((L, LO + 2 * (K - 1)), dtype=np.float32)
    j = np.arange(LO)
    src = np.maximum((j + 0.5) / SC - 0.5, 0.0)   # PyTorch clamps negative coords to 0
    i0 = np.floor(src).astype(np.int64)
    i1 = np.minimum(i0 + 1, L - 1)
    lam = (src - i0).astype(np.float32)
    np.add.at(Upad, (i0, j + K - 1), 1.0 - lam)
    np.add.at(Upad, (i1, j + K - 1), lam)
    # Pre-flipped taps: Wflip[k, ci, co] = W[ci, co, K-1-k]
    Wflip = np.transpose(weight_np[:, :, ::-1], (2, 0, 1)).astype(np.float32)  # (K, C4, C5)
    A = np.zeros((C4, L, C5, LOUT_PAD), dtype=np.float32)
    for k in range(K):
        A[:, :, :, :LOUT] += (Wflip[k][:, None, :, None] *
                              Upad[None, :, None, k:k + LOUT])
    return A.reshape(C4 * L, C5 * LOUT_PAD)


def build_padded_bias(bias_np: np.ndarray) -> np.ndarray:
    """Bias broadcast over the padded output slab, (1, C5*LOUT_PAD); padded cols = 0."""
    b = np.zeros((C5, LOUT_PAD), dtype=np.float32)
    b[:, :LOUT] = bias_np[:, None].astype(np.float32)
    return b.reshape(1, C5 * LOUT_PAD)


# ------------------------------ Pallas kernel ------------------------------
def decoder2_kernel(x_ref, a_ref, b_ref, o_ref):
    # x_ref : (N, C4*L)            flattened batch of inputs
    # a_ref : (C4*L, C5*LOUT_PAD)  fused upsample+pad+conv-transpose matrix
    # b_ref : (1, C5*LOUT_PAD)     padded bias
    # o_ref : (N, C5*LOUT_PAD)     lane-dense output slab
    acc = jnp.dot(x_ref[...], a_ref[...], preferred_element_type=jnp.float32)
    acc = acc + b_ref[...]                       # sublane-broadcast bias add (VPU)
    o_ref[...] = jnp.maximum(acc, 0.0).astype(o_ref.dtype)


def decoder2_forward(x, A_flat, B_flat):
    """x: (N, C4, L) f32.  Returns (N, C5, LOUT) f32."""
    x_flat = x.reshape(N, C4 * L)
    cost = pl.CostEstimate(
        flops=2 * N * (C4 * L) * (C5 * LOUT_PAD),
        transcendentals=0,
        bytes_accessed=4 * (N * C4 * L + C4 * L * C5 * LOUT_PAD
                            + C5 * LOUT_PAD + N * C5 * LOUT_PAD),
    )
    out_flat = pl.pallas_call(
        decoder2_kernel,
        out_shape=jax.ShapeDtypeStruct((N, C5 * LOUT_PAD), jnp.float32),
        in_specs=[
            pl.BlockSpec(memory_space=pltpu.MemorySpace.VMEM),   # x_flat (2, 64)
            pl.BlockSpec(memory_space=pltpu.MemorySpace.VMEM),   # A      (64, 1024)
            pl.BlockSpec(memory_space=pltpu.MemorySpace.VMEM),   # bias   (1, 1024)
        ],
        out_specs=pl.BlockSpec(memory_space=pltpu.MemorySpace.VMEM),
        cost_estimate=cost,
    )(x_flat, A_flat, B_flat)
    # wrapper-side un-pad back to the true output length (layout plumbing only)
    return out_flat.reshape(N, C5, LOUT_PAD)[:, :, :LOUT]


# --------------------------- pure-JAX reference ---------------------------
def decoder2_reference(x, weight, bias):
    # linear upsample, align_corners=False (matches torch.nn.Upsample)
    j = np.arange(LO)
    src = np.maximum((j + 0.5) / SC - 0.5, 0.0)
    i0 = np.floor(src).astype(np.int32)
    i1 = np.where(i0 < L - 1, i0 + 1, i0)
    lam = (src - i0).astype(np.float32)
    xu = x[:, :, i0] * (1.0 - lam) + x[:, :, i1] * lam          # (N, C4, LO)

    # conv_transpose1d (stride=1, pad=0) as full correlation with flipped taps
    xpad = jnp.pad(xu, ((0, 0), (0, 0), (K - 1, K - 1)))
    out = jnp.broadcast_to(bias[None, :, None], (N, C5, LOUT)).astype(jnp.float32)
    for k in range(K):
        out = out + jnp.einsum('ncl,cd->ndl',
                               xpad[:, :, k:k + LOUT], weight[:, :, K - 1 - k])
    return jnp.maximum(out, 0.0)


# ---------------------------------- main -----------------------------------
if __name__ == "__main__":
    key = jax.random.PRNGKey(0)
    kx, kw, kb = jax.random.split(key, 3)

    x = jax.random.normal(kx, (N, C4, L), dtype=jnp.float32)
    # ConvTranspose1d weight shape in PyTorch: (in_channels, out_channels, kernel_size)
    weight = 0.1 * jax.random.normal(kw, (C4, C5, K), dtype=jnp.float32)
    bias = 0.05 * jax.random.normal(kb, (C5,), dtype=jnp.float32)

    # Fold Upsample + zero-pad + flipped conv-transpose taps into one matrix (glue, once).
    A_flat = jnp.asarray(build_fused_matrix(np.asarray(weight)))
    B_flat = jnp.asarray(build_padded_bias(np.asarray(bias)))

    out = jax.block_until_ready(decoder2_forward(x, A_flat, B_flat))
    ref = jax.block_until_ready(decoder2_reference(x, weight, bias))

    assert out.shape == (N, C5, LOUT), out.shape
    np.testing.assert_allclose(np.asarray(out), np.asarray(ref), rtol=1e-5, atol=1e-5)

    print("KERNEL_OK")
</pallas_src>

<mosaic_0001>
module attributes {stable_mosaic.version = 11 : i64} {
  func.func @decoder2_kernel(%arg0: memref<2x64xf32, #tpu.memory_space<vmem>>, %arg1: memref<64x1024xf32, #tpu.memory_space<vmem>>, %arg2: memref<1x1024xf32, #tpu.memory_space<vmem>>, %arg3: memref<2x1024xf32, #tpu.memory_space<vmem>>) attributes {dimension_semantics = [], scalar_prefetch = 0 : i64, scratch_operands = 0 : i64, tpu.core_type = #tpu.core_type<tc>} {
    %c0 = arith.constant 0 : index
    %c0_0 = arith.constant 0 : index
    %0 = vector.load %arg0[%c0, %c0_0] : memref<2x64xf32, #tpu.memory_space<vmem>>, vector<2x64xf32>
    %c0_1 = arith.constant 0 : index
    %c0_2 = arith.constant 0 : index
    %1 = vector.load %arg1[%c0_1, %c0_2] : memref<64x1024xf32, #tpu.memory_space<vmem>>, vector<64x1024xf32>
    %cst = arith.constant dense<0.000000e+00> : vector<2x1024xf32>
    %2 = tpu.matmul %0, %1, %cst {dimension_numbers = #tpu.dot_dimension_numbers<[1], [0], [0], [1], [0, 0, 1, 1], [], []>} : vector<2x64xf32>, vector<64x1024xf32>, vector<2x1024xf32> -> vector<2x1024xf32>
    %c0_3 = arith.constant 0 : index
    %c0_4 = arith.constant 0 : index
    %3 = vector.load %arg2[%c0_3, %c0_4] : memref<1x1024xf32, #tpu.memory_space<vmem>>, vector<1x1024xf32>
    %4 = vector.broadcast %3 : vector<1x1024xf32> to vector<2x1024xf32>
    %5 = arith.addf %2, %4 : vector<2x1024xf32>
    %cst_5 = arith.constant 0.000000e+00 : f32
    %6 = vector.broadcast %cst_5 : f32 to vector<2x1024xf32>
    %7 = arith.maximumf %5, %6 : vector<2x1024xf32>
    %c0_6 = arith.constant 0 : index
    %c0_7 = arith.constant 0 : index
    %8 = vector.load %arg3[%c0_6, %c0_7] : memref<2x1024xf32, #tpu.memory_space<vmem>>, vector<2x1024xf32>
    tpu.vector_store %arg3[%c0_6, %c0_7], %7 {strides = array<i32>} : memref<2x1024xf32, #tpu.memory_space<vmem>>, vector<2x1024xf32>,
    return
  }
}

</mosaic_0001>

<llo_original>
// kernel: tpu_custom_call.1
$region0: #{tpu_custom_call.1}
  #allocation0 [shape = 'u32[]', space=smem, size = 0x4, offset = 0x4, fixed_abs, tag = 'smem constant byte address 0x4 - core index']
  #allocation1 [shape = 'u32[144,128]{1,0:T(1,128)}', space=vmem, size = 0x12000, scoped, tag = 'internal scratch']
  %s0 = inlined_call_operand.hbm [shape: f32[2,64], index: 0, kind: input, shape index: {}]
  %s1 = inlined_call_operand.hbm [shape: f32[64,1024], index: 1, kind: input, shape index: {}]
  %s2 = inlined_call_operand.hbm [shape: f32[1,1024], index: 2, kind: input, shape index: {}]
  %s3 = inlined_call_operand.hbm [shape: f32[2,1024], index: 3, kind: output, shape index: {}]
  %s4 = sld [smem:[#allocation0]]
  $region34: #{tpu_custom_call.1} parent=0
    _
  %s6 = ssub.s32 1, %s4
  %s7 = scalar_select 0, %s6, %s4
  $region1: #{tpu_custom_call.1} parent=0
    #allocation2 [shape = 'u8[1024]{0}', space=vmem, size = 0x400, scoped, tag = 'input window, operand 0, single buffered']
    #allocation3 [shape = 's32[1]{0}', space=sflag, size = 0x4, scoped, tag = 'scoped memory for tpu_custom_call.1']
    #allocation4 [shape = 's32[1]{0}', space=sflag, size = 0x4, scoped, tag = 'scoped memory for tpu_custom_call.1']
    #allocation5 [shape = 'u8[262144]{0}', space=vmem, size = 0x40000, scoped, tag = 'input window, operand 1, single buffered']
    #allocation6 [shape = 's32[1]{0}', space=sflag, size = 0x4, scoped, tag = 'scoped memory for tpu_custom_call.1']
    #allocation7 [shape = 'u8[4096]{0}', space=vmem, size = 0x1000, scoped, tag = 'input window, operand 2, single buffered']
    #allocation8 [shape = 'u8[8192]{0}', space=vmem, size = 0x2000, scoped, tag = 'output window, operand 0, single buffered']
    %8 = vsyncpa [#allocation3], 0
    %9 = vsyncpa [#allocation6], 0
    %10 = vsyncpa [#allocation4], 0
    // Predicated region
    $region2: #{tpu_custom_call.1} parent=1 // pred_check
      _
    $region3: #{tpu_custom_call.1} parent=1 // pred_check_branch
      %12 = sbr.rel (0) target = $region5
    $region4: #{tpu_custom_call.1} parent=1 // pred_region
      %s14 = ssub.s32 32, 32
      %15 = vsyncadd [#allocation3], %s14
      %s17 = sshll.u32 [#allocation2], 4
      %s18 = int_to_ptr.vmem [resolvable:$true] %s17
      %20 = dma.hbm_to_vmem [thread:$0]  %s0, 32, %s18, [#allocation3]
    $region5: #{tpu_custom_call.1} parent=1 // pred_fallthru
      _
    // Predicated region
    $region6: #{tpu_custom_call.1} parent=1 // pred_check
      _
    $region7: #{tpu_custom_call.1} parent=1 // pred_check_branch
      %22 = sbr.rel (0) target = $region9
    $region8: #{tpu_custom_call.1} parent=1 // pred_region
      %s24 = ssub.s32 8192, 8192
      %25 = vsyncadd [#allocation6], %s24
      %s26 = sshll.u32 [#allocation5], 4
      %s27 = int_to_ptr.vmem [resolvable:$true] %s26
      %32 = dma.hbm_to_vmem [thread:$0]  %s1, 8192, %s27, [#allocation6], 1024, 1024, 64
    $region9: #{tpu_custom_call.1} parent=1 // pred_fallthru
      _
    // Predicated region
    $region10: #{tpu_custom_call.1} parent=1 // pred_check
      _
    $region11: #{tpu_custom_call.1} parent=1 // pred_check_branch
      %34 = sbr.rel (0) target = $region13
    $region12: #{tpu_custom_call.1} parent=1 // pred_region
      %s36 = ssub.s32 128, 128
      %37 = vsyncadd [#allocation6], %s36
      %s39 = sshll.u32 [#allocation7], 4
      %s40 = int_to_ptr.vmem [resolvable:$true] %s39
      %42 = dma.hbm_to_vmem [thread:$0]  %s2, 128, %s40, [#allocation6]
    $region13: #{tpu_custom_call.1} parent=1 // pred_fallthru
      _
    // Predicated region
    $region14: #{tpu_custom_call.1} parent=1 // pred_check
      _
    $region15: #{tpu_custom_call.1} parent=1 // pred_check_branch
      %44 = sbr.rel (0) target = $region17
    $region16: #{tpu_custom_call.1} parent=1 // pred_region
      %45 = dma.done [#allocation3], 32
    $region17: #{tpu_custom_call.1} parent=1 // pred_fallthru
      _
    // Predicated region
    $region18: #{tpu_custom_call.1} parent=1 // pred_check
      _
    $region19: #{tpu_custom_call.1} parent=1 // pred_check_branch
      %47 = sbr.rel (0) target = $region21
    $region20: #{tpu_custom_call.1} parent=1 // pred_region
      %48 = dma.done [#allocation6], 8192
    $region21: #{tpu_custom_call.1} parent=1 // pred_fallthru
      _
    // Predicated region
    $region22: #{tpu_custom_call.1} parent=1 // pred_check
      _
    $region23: #{tpu_custom_call.1} parent=1 // pred_check_branch
      %50 = sbr.rel (0) target = $region25
    $region24: #{tpu_custom_call.1} parent=1 // pred_region
      %51 = dma.done [#allocation6], 128
    $region25: #{tpu_custom_call.1} parent=1 // pred_fallthru
      _
    %v52 = vld [vmem:[#allocation2] sm:$0x3]
    %v53 = vld [vmem:[#allocation5] sm:$0xff]
    %v54 = vld [vmem:[#allocation5 + $0x8] sm:$0xff]
    %v55 = vld [vmem:[#allocation5 + $0x10] sm:$0xff]
    %v56 = vld [vmem:[#allocation5 + $0x18] sm:$0xff]
    %v57 = vld [vmem:[#allocation5 + $0x20] sm:$0xff]
    %v58 = vld [vmem:[#allocation5 + $0x28] sm:$0xff]
    %v59 = vld [vmem:[#allocation5 + $0x30] sm:$0xff]
    %v60 = vld [vmem:[#allocation5 + $0x38] sm:$0xff]
    %v61 = vld [vmem:[#allocation5 + $0x40] sm:$0xff]
    %v62 = vld [vmem:[#allocation5 + $0x48] sm:$0xff]
    %v63 = vld [vmem:[#allocation5 + $0x50] sm:$0xff]
    %v64 = vld [vmem:[#allocation5 + $0x58] sm:$0xff]
    %v65 = vld [vmem:[#allocation5 + $0x60] sm:$0xff]
    %v66 = vld [vmem:[#allocation5 + $0x68] sm:$0xff]
    %v67 = vld [vmem:[#allocation5 + $0x70] sm:$0xff]
    %v68 = vld [vmem:[#allocation5 + $0x78] sm:$0xff]
    %v69 = vld [vmem:[#allocation5 + $0x80] sm:$0xff]
    %v70 = vld [vmem:[#allocation5 + $0x88] sm:$0xff]
    %v71 = vld [vmem:[#allocation5 + $0x90] sm:$0xff]
    %v72 = vld [vmem:[#allocation5 + $0x98] sm:$0xff]
    %v73 = vld [vmem:[#allocation5 + $0xa0] sm:$0xff]
    %v74 = vld [vmem:[#allocation5 + $0xa8] sm:$0xff]
    %v75 = vld [vmem:[#allocation5 + $0xb0] sm:$0xff]
    %v76 = vld [vmem:[#allocation5 + $0xb8] sm:$0xff]
    %v77 = vld [vmem:[#allocation5 + $0xc0] sm:$0xff]
    %v78 = vld [vmem:[#allocation5 + $0xc8] sm:$0xff]
    %v79 = vld [vmem:[#allocation5 + $0xd0] sm:$0xff]
    %v80 = vld [vmem:[#allocation5 + $0xd8] sm:$0xff]
    %v81 = vld [vmem:[#allocation5 + $0xe0] sm:$0xff]
    %v82 = vld [vmem:[#allocation5 + $0xe8] sm:$0xff]
    %v83 = vld [vmem:[#allocation5 + $0xf0] sm:$0xff]
    %v84 = vld [vmem:[#allocation5 + $0xf8] sm:$0xff]
    %v85 = vld [vmem:[#allocation5 + $0x100] sm:$0xff]
    %v86 = vld [vmem:[#allocation5 + $0x108] sm:$0xff]
    %v87 = vld [vmem:[#allocation5 + $0x110] sm:$0xff]
    %v88 = vld [vmem:[#allocation5 + $0x118] sm:$0xff]
    %v89 = vld [vmem:[#allocation5 + $0x120] sm:$0xff]
    %v90 = vld [vmem:[#allocation5 + $0x128] sm:$0xff]
    %v91 = vld [vmem:[#allocation5 + $0x130] sm:$0xff]
    %v92 = vld [vmem:[#allocation5 + $0x138] sm:$0xff]
    %v93 = vld [vmem:[#allocation5 + $0x140] sm:$0xff]
    %v94 = vld [vmem:[#allocation5 + $0x148] sm:$0xff]
    %v95 = vld [vmem:[#allocation5 + $0x150] sm:$0xff]
    %v96 = vld [vmem:[#allocation5 + $0x158] sm:$0xff]
    %v97 = vld [vmem:[#allocation5 + $0x160] sm:$0xff]
    %v98 = vld [vmem:[#allocation5 + $0x168] sm:$0xff]
    %v99 = vld [vmem:[#allocation5 + $0x170] sm:$0xff]
    %v100 = vld [vmem:[#allocation5 + $0x178] sm:$0xff]
    %v101 = vld [vmem:[#allocation5 + $0x180] sm:$0xff]
    %v102 = vld [vmem:[#allocation5 + $0x188] sm:$0xff]
    %v103 = vld [vmem:[#allocation5 + $0x190] sm:$0xff]
    %v104 = vld [vmem:[#allocation5 + $0x198] sm:$0xff]
    %v105 = vld [vmem:[#allocation5 + $0x1a0] sm:$0xff]
    %v106 = vld [vmem:[#allocation5 + $0x1a8] sm:$0xff]
    %v107 = vld [vmem:[#allocation5 + $0x1b0] sm:$0xff]
    %v108 = vld [vmem:[#allocation5 + $0x1b8] sm:$0xff]
    %v109 = vld [vmem:[#allocation5 + $0x1c0] sm:$0xff]
    %v110 = vld [vmem:[#allocation5 + $0x1c8] sm:$0xff]
    %v111 = vld [vmem:[#allocation5 + $0x1d0] sm:$0xff]
    %v112 = vld [vmem:[#allocation5 + $0x1d8] sm:$0xff]
    %v113 = vld [vmem:[#allocation5 + $0x1e0] sm:$0xff]
    %v114 = vld [vmem:[#allocation5 + $0x1e8] sm:$0xff]
    %v115 = vld [vmem:[#allocation5 + $0x1f0] sm:$0xff]
    %v116 = vld [vmem:[#allocation5 + $0x1f8] sm:$0xff]
    %v117 = vld [vmem:[#allocation7] sm:$0xff]
    %v119 = vlaneseq
    %v120 = vshrl.u32 %v119, 7
    %v121 = vsub.s32 0, %v120
    %v122 = vrot.slane %v117, %v121
    %v123 = vlaneseq
    %v124 = vshrl.u32 %v123, 7
    %v125 = vsub.s32 1, %v124
    %v126 = vrot.slane %v117, %v125
    %v127 = vlaneseq
    %v128 = vshrl.u32 %v127, 7
    %v129 = vsub.s32 2, %v128
    %v130 = vrot.slane %v117, %v129
    %v131 = vlaneseq
    %v132 = vshrl.u32 %v131, 7
    %v133 = vsub.s32 3, %v132
    %v134 = vrot.slane %v117, %v133
    %v135 = vlaneseq
    %v136 = vshrl.u32 %v135, 7
    %v137 = vsub.s32 4, %v136
    %v138 = vrot.slane %v117, %v137
    %v139 = vlaneseq
    %v140 = vshrl.u32 %v139, 7
    %v141 = vsub.s32 5, %v140
    %v142 = vrot.slane %v117, %v141
    %v143 = vlaneseq
    %v144 = vshrl.u32 %v143, 7
    %v145 = vsub.s32 6, %v144
    %v146 = vrot.slane %v117, %v145
    %v147 = vlaneseq
    %v148 = vshrl.u32 %v147, 7
    %v149 = vsub.s32 7, %v148
    %v150 = vrot.slane %v117, %v149
    %vm159 = vcmask 523264
    %v161 = vsel %vm159, %v52, 0
    %163 = vmatprep.subr.mxu0 %v54
    %164 = vmatpush1.msra.mxu0 %v53
    %165 = vmatprep.subr.mxu0 %v62
    %166 = vmatpush1.msra.mxu0 %v61
    %167 = vmatprep.subr.mxu0 %v70
    %168 = vmatpush1.msra.mxu0 %v69
    %169 = vmatprep.subr.mxu0 %v78
    %170 = vmatpush1.msra.mxu0 %v77
    %171 = vmatprep.subr.mxu0 %v86
    %172 = vmatpush1.msra.mxu0 %v85
    %173 = vmatprep.subr.mxu0 %v94
    %174 = vmatpush1.msra.mxu0 %v93
    %175 = vmatprep.subr.mxu0 %v102
    %176 = vmatpush1.msra.mxu0 %v101
    %177 = vmatprep.subr.mxu0 %v110
    %178 = vmatpush1.msra.mxu0 %v109
    %179 = vmatprep.subr.mxu0 0.0
    %180 = vmatpush1.msra.mxu0 0.0
    %181 = vmatprep.subr.mxu0 0.0
    %182 = vmatpush1.msra.mxu0 0.0
    %183 = vmatprep.subr.mxu0 0.0
    %184 = vmatpush1.msra.mxu0 0.0
    %185 = vmatprep.subr.mxu0 0.0
    %186 = vmatpush1.msra.mxu0 0.0
    %187 = vmatprep.subr.mxu0 0.0
    %188 = vmatpush1.msra.mxu0 0.0
    %189 = vmatprep.subr.mxu0 0.0
    %190 = vmatpush1.msra.mxu0 0.0
    %191 = vmatprep.subr.mxu0 0.0
    %192 = vmatpush1.msra.mxu0 0.0
    %193 = vmatprep.subr.mxu0 0.0
    %194 = vmatpush1.msra.mxu0 0.0
    %195 = vmatprep.subr.mxu0 0.0
    %196 = vmatpush1.msra.mxu0 0.0
    %197 = vmatprep.subr.mxu0 0.0
    %198 = vmatpush1.msra.mxu0 0.0
    %199 = vmatprep.subr.mxu0 0.0
    %200 = vmatpush1.msra.mxu0 0.0
    %201 = vmatprep.subr.mxu0 0.0
    %202 = vmatpush1.msra.mxu0 0.0
    %203 = vmatprep.subr.mxu0 0.0
    %204 = vmatpush1.msra.mxu0 0.0
    %205 = vmatprep.subr.mxu0 0.0
    %206 = vmatpush1.msra.mxu0 0.0
    %207 = vmatprep.subr.mxu0 0.0
    %208 = vmatpush1.msra.mxu0 0.0
    %209 = vmatprep.subr.mxu0 0.0
    %210 = vmatpush1.msra.mxu0 0.0
    %211 = vmatprep.subr.mxu0 0.0
    %212 = vmatpush1.msra.mxu0 0.0
    %213 = vmatprep.subr.mxu0 0.0
    %214 = vmatpush1.msra.mxu0 0.0
    %215 = vmatprep.subr.mxu0 0.0
    %216 = vmatpush1.msra.mxu0 0.0
    %217 = vmatprep.subr.mxu0 0.0
    %218 = vmatpush1.msra.mxu0 0.0
    %219 = vmatprep.subr.mxu0 0.0
    %220 = vmatpush1.msra.mxu0 0.0
    %221 = vmatprep.subr.mxu0 0.0
    %222 = vmatpush1.msra.mxu0 0.0
    %223 = vmatprep.subr.mxu0 0.0
    %224 = vmatpush1.msra.mxu0 0.0
    %225 = vmatprep.subr.mxu0 0.0
    %226 = vmatpush1.msra.mxu0 0.0
    %227 = vmatprep.mubr.f32.mxu0 0.0
    %228 = vmatmul.mubr.f32.gmra.mrb[0].mxu0 %v161
    %v229 = vpop.f32.mrb[0].mxu0
    %v230 = vadd.f32 %v122, %v229
    %v231 = vpop.f32.mrb[0].mxu0
    %v232 = vadd.f32 %v126, %v231
    %233 = vdwg.mxu0
    %234 = vmatprep.subr.mxu0 %v56
    %235 = vmatpush1.msra.mxu0 %v55
    %236 = vmatprep.subr.mxu0 %v64
    %237 = vmatpush1.msra.mxu0 %v63
    %238 = vmatprep.subr.mxu0 %v72
    %239 = vmatpush1.msra.mxu0 %v71
    %240 = vmatprep.subr.mxu0 %v80
    %241 = vmatpush1.msra.mxu0 %v79
    %242 = vmatprep.subr.mxu0 %v88
    %243 = vmatpush1.msra.mxu0 %v87
    %244 = vmatprep.subr.mxu0 %v96
    %245 = vmatpush1.msra.mxu0 %v95
    %246 = vmatprep.subr.mxu0 %v104
    %247 = vmatpush1.msra.mxu0 %v103
    %248 = vmatprep.subr.mxu0 %v112
    %249 = vmatpush1.msra.mxu0 %v111
    %250 = vmatprep.subr.mxu0 0.0
    %251 = vmatpush1.msra.mxu0 0.0
    %252 = vmatprep.subr.mxu0 0.0
    %253 = vmatpush1.msra.mxu0 0.0
    %254 = vmatprep.subr.mxu0 0.0
    %255 = vmatpush1.msra.mxu0 0.0
    %256 = vmatprep.subr.mxu0 0.0
    %257 = vmatpush1.msra.mxu0 0.0
    %258 = vmatprep.subr.mxu0 0.0
    %259 = vmatpush1.msra.mxu0 0.0
    %260 = vmatprep.subr.mxu0 0.0
    %261 = vmatpush1.msra.mxu0 0.0
    %262 = vmatprep.subr.mxu0 0.0
    %263 = vmatpush1.msra.mxu0 0.0
    %264 = vmatprep.subr.mxu0 0.0
    %265 = vmatpush1.msra.mxu0 0.0
    %266 = vmatprep.subr.mxu0 0.0
    %267 = vmatpush1.msra.mxu0 0.0
    %268 = vmatprep.subr.mxu0 0.0
    %269 = vmatpush1.msra.mxu0 0.0
    %270 = vmatprep.subr.mxu0 0.0
    %271 = vmatpush1.msra.mxu0 0.0
    %272 = vmatprep.subr.mxu0 0.0
    %273 = vmatpush1.msra.mxu0 0.0
    %274 = vmatprep.subr.mxu0 0.0
    %275 = vmatpush1.msra.mxu0 0.0
    %276 = vmatprep.subr.mxu0 0.0
    %277 = vmatpush1.msra.mxu0 0.0
    %278 = vmatprep.subr.mxu0 0.0
    %279 = vmatpush1.msra.mxu0 0.0
    %280 = vmatprep.subr.mxu0 0.0
    %281 = vmatpush1.msra.mxu0 0.0
    %282 = vmatprep.subr.mxu0 0.0
    %283 = vmatpush1.msra.mxu0 0.0
    %284 = vmatprep.subr.mxu0 0.0
    %285 = vmatpush1.msra.mxu0 0.0
    %286 = vmatprep.subr.mxu0 0.0
    %287 = vmatpush1.msra.mxu0 0.0
    %288 = vmatprep.subr.mxu0 0.0
    %289 = vmatpush1.msra.mxu0 0.0
    %290 = vmatprep.subr.mxu0 0.0
    %291 = vmatpush1.msra.mxu0 0.0
    %292 = vmatprep.subr.mxu0 0.0
    %293 = vmatpush1.msra.mxu0 0.0
    %294 = vmatprep.subr.mxu0 0.0
    %295 = vmatpush1.msra.mxu0 0.0
    %296 = vmatprep.subr.mxu0 0.0
    %297 = vmatpush1.msra.mxu0 0.0
    %298 = vmatprep.mubr.f32.mxu0 0.0
    %299 = vmatmul.mubr.f32.gmra.mrb[0].mxu0 %v161
    %v300 = vpop.f32.mrb[0].mxu0
    %v301 = vadd.f32 %v130, %v300
    %v302 = vpop.f32.mrb[0].mxu0
    %v303 = vadd.f32 %v134, %v302
    %304 = vdwg.mxu0
    %305 = vmatprep.subr.mxu0 %v58
    %306 = vmatpush1.msra.mxu0 %v57
    %307 = vmatprep.subr.mxu0 %v66
    %308 = vmatpush1.msra.mxu0 %v65
    %309 = vmatprep.subr.mxu0 %v74
    %310 = vmatpush1.msra.mxu0 %v73
    %311 = vmatprep.subr.mxu0 %v82
    %312 = vmatpush1.msra.mxu0 %v81
    %313 = vmatprep.subr.mxu0 %v90
    %314 = vmatpush1.msra.mxu0 %v89
    %315 = vmatprep.subr.mxu0 %v98
    %316 = vmatpush1.msra.mxu0 %v97
    %317 = vmatprep.subr.mxu0 %v106
    %318 = vmatpush1.msra.mxu0 %v105
    %319 = vmatprep.subr.mxu0 %v114
    %320 = vmatpush1.msra.mxu0 %v113
    %321 = vmatprep.subr.mxu0 0.0
    %322 = vmatpush1.msra.mxu0 0.0
    %323 = vmatprep.subr.mxu0 0.0
    %324 = vmatpush1.msra.mxu0 0.0
    %325 = vmatprep.subr.mxu0 0.0
    %326 = vmatpush1.msra.mxu0 0.0
    %327 = vmatprep.subr.mxu0 0.0
    %328 = vmatpush1.msra.mxu0 0.0
    %329 = vmatprep.subr.mxu0 0.0
    %330 = vmatpush1.msra.mxu0 0.0
    %331 = vmatprep.subr.mxu0 0.0
    %332 = vmatpush1.msra.mxu0 0.0
    %333 = vmatprep.subr.mxu0 0.0
    %334 = vmatpush1.msra.mxu0 0.0
    %335 = vmatprep.subr.mxu0 0.0
    %336 = vmatpush1.msra.mxu0 0.0
    %337 = vmatprep.subr.mxu0 0.0
    %338 = vmatpush1.msra.mxu0 0.0
    %339 = vmatprep.subr.mxu0 0.0
    %340 = vmatpush1.msra.mxu0 0.0
    %341 = vmatprep.subr.mxu0 0.0
    %342 = vmatpush1.msra.mxu0 0.0
    %343 = vmatprep.subr.mxu0 0.0
    %344 = vmatpush1.msra.mxu0 0.0
    %345 = vmatprep.subr.mxu0 0.0
    %346 = vmatpush1.msra.mxu0 0.0
    %347 = vmatprep.subr.mxu0 0.0
    %348 = vmatpush1.msra.mxu0 0.0
    %349 = vmatprep.subr.mxu0 0.0
    %350 = vmatpush1.msra.mxu0 0.0
    %351 = vmatprep.subr.mxu0 0.0
    %352 = vmatpush1.msra.mxu0 0.0
    %353 = vmatprep.subr.mxu0 0.0
    %354 = vmatpush1.msra.mxu0 0.0
    %355 = vmatprep.subr.mxu0 0.0
    %356 = vmatpush1.msra.mxu0 0.0
    %357 = vmatprep.subr.mxu0 0.0
    %358 = vmatpush1.msra.mxu0 0.0
    %359 = vmatprep.subr.mxu0 0.0
    %360 = vmatpush1.msra.mxu0 0.0
    %361 = vmatprep.subr.mxu0 0.0
    %362 = vmatpush1.msra.mxu0 0.0
    %363 = vmatprep.subr.mxu0 0.0
    %364 = vmatpush1.msra.mxu0 0.0
    %365 = vmatprep.subr.mxu0 0.0
    %366 = vmatpush1.msra.mxu0 0.0
    %367 = vmatprep.subr.mxu0 0.0
    %368 = vmatpush1.msra.mxu0 0.0
    %369 = vmatprep.mubr.f32.mxu0 0.0
    %370 = vmatmul.mubr.f32.gmra.mrb[0].mxu0 %v161
    %v371 = vpop.f32.mrb[0].mxu0
    %v372 = vadd.f32 %v138, %v371
    %v373 = vpop.f32.mrb[0].mxu0
    %v374 = vadd.f32 %v142, %v373
    %375 = vdwg.mxu0
    %376 = vmatprep.subr.mxu0 %v60
    %377 = vmatpush1.msra.mxu0 %v59
    %378 = vmatprep.subr.mxu0 %v68
    %379 = vmatpush1.msra.mxu0 %v67
    %380 = vmatprep.subr.mxu0 %v76
    %381 = vmatpush1.msra.mxu0 %v75
    %382 = vmatprep.subr.mxu0 %v84
    %383 = vmatpush1.msra.mxu0 %v83
    %384 = vmatprep.subr.mxu0 %v92
    %385 = vmatpush1.msra.mxu0 %v91
    %386 = vmatprep.subr.mxu0 %v100
    %387 = vmatpush1.msra.mxu0 %v99
    %388 = vmatprep.subr.mxu0 %v108
    %389 = vmatpush1.msra.mxu0 %v107
    %390 = vmatprep.subr.mxu0 %v116
    %391 = vmatpush1.msra.mxu0 %v115
    %392 = vmatprep.subr.mxu0 0.0
    %393 = vmatpush1.msra.mxu0 0.0
    %394 = vmatprep.subr.mxu0 0.0
    %395 = vmatpush1.msra.mxu0 0.0
    %396 = vmatprep.subr.mxu0 0.0
    %397 = vmatpush1.msra.mxu0 0.0
    %398 = vmatprep.subr.mxu0 0.0
    %399 = vmatpush1.msra.mxu0 0.0
    %400 = vmatprep.subr.mxu0 0.0
    %401 = vmatpush1.msra.mxu0 0.0
    %402 = vmatprep.subr.mxu0 0.0
    %403 = vmatpush1.msra.mxu0 0.0
    %404 = vmatprep.subr.mxu0 0.0
    %405 = vmatpush1.msra.mxu0 0.0
    %406 = vmatprep.subr.mxu0 0.0
    %407 = vmatpush1.msra.mxu0 0.0
    %408 = vmatprep.subr.mxu0 0.0
    %409 = vmatpush1.msra.mxu0 0.0
    %410 = vmatprep.subr.mxu0 0.0
    %411 = vmatpush1.msra.mxu0 0.0
    %412 = vmatprep.subr.mxu0 0.0
    %413 = vmatpush1.msra.mxu0 0.0
    %414 = vmatprep.subr.mxu0 0.0
    %415 = vmatpush1.msra.mxu0 0.0
    %416 = vmatprep.subr.mxu0 0.0
    %417 = vmatpush1.msra.mxu0 0.0
    %418 = vmatprep.subr.mxu0 0.0
    %419 = vmatpush1.msra.mxu0 0.0
    %420 = vmatprep.subr.mxu0 0.0
    %421 = vmatpush1.msra.mxu0 0.0
    %422 = vmatprep.subr.mxu0 0.0
    %423 = vmatpush1.msra.mxu0 0.0
    %424 = vmatprep.subr.mxu0 0.0
    %425 = vmatpush1.msra.mxu0 0.0
    %426 = vmatprep.subr.mxu0 0.0
    %427 = vmatpush1.msra.mxu0 0.0
    %428 = vmatprep.subr.mxu0 0.0
    %429 = vmatpush1.msra.mxu0 0.0
    %430 = vmatprep.subr.mxu0 0.0
    %431 = vmatpush1.msra.mxu0 0.0
    %432 = vmatprep.subr.mxu0 0.0
    %433 = vmatpush1.msra.mxu0 0.0
    %434 = vmatprep.subr.mxu0 0.0
    %435 = vmatpush1.msra.mxu0 0.0
    %436 = vmatprep.subr.mxu0 0.0
    %437 = vmatpush1.msra.mxu0 0.0
    %438 = vmatprep.subr.mxu0 0.0
    %439 = vmatpush1.msra.mxu0 0.0
    %440 = vmatprep.mubr.f32.mxu0 0.0
    %441 = vmatmul.mubr.f32.gmra.mrb[0].mxu0 %v161
    %v442 = vpop.f32.mrb[0].mxu0
    %v443 = vadd.f32 %v146, %v442
    %v444 = vpop.f32.mrb[0].mxu0
    %v445 = vadd.f32 %v150, %v444
    %446 = vdwg.mxu0
    %v447 = vmax.f32 %v230, 0.0
    %v448 = vmax.f32 %v232, 0.0
    %v449 = vmax.f32 %v301, 0.0
    %v450 = vmax.f32 %v303, 0.0
    %v451 = vmax.f32 %v372, 0.0
    %v452 = vmax.f32 %v374, 0.0
    %v453 = vmax.f32 %v443, 0.0
    %v454 = vmax.f32 %v445, 0.0
    %v463 = vcombine.low %v447, %v448
    %v464 = vcombine.low %v449, %v450
    %v466 = vunpack.c.l.s4 1983009808
    %v467 = vunpack.c.0.s8 %v466
    %v468 = vlaneseq
    %v469 = vshrl.u32 %v468, 7
    %v470 = vsub.s32 %v467, %v469
    %v471 = vrot.slane %v463, %v470
    %v473 = vunpack.c.l.s4 1983009808
    %v474 = vunpack.c.0.s8 %v473
    %v475 = vlaneseq
    %v476 = vshrl.u32 %v475, 7
    %v477 = vsub.s32 %v474, %v476
    %v478 = vrot.slane %v464, %v477
    %v479 = vcombine.low %v471, %v478
    %v480 = vcombine.low %v451, %v452
    %v481 = vcombine.low %v453, %v454
    %v483 = vunpack.c.l.s4 1983009808
    %v484 = vunpack.c.0.s8 %v483
    %v485 = vlaneseq
    %v486 = vshrl.u32 %v485, 7
    %v487 = vsub.s32 %v484, %v486
    %v488 = vrot.slane %v480, %v487
    %v490 = vunpack.c.l.s4 1983009808
    %v491 = vunpack.c.0.s8 %v490
    %v492 = vlaneseq
    %v493 = vshrl.u32 %v492, 7
    %v494 = vsub.s32 %v491, %v493
    %v495 = vrot.slane %v481, %v494
    %v496 = vcombine.low %v488, %v495
    %499 = vst [vmem:[#allocation8] sm:$0xff] %v479
    %500 = vst [vmem:[#allocation8 + $0x8] sm:$0xff] %v496
    // Predicated region
    $region26: #{tpu_custom_call.1} parent=1 // pred_check
      _
    $region27: #{tpu_custom_call.1} parent=1 // pred_check_branch
      %502 = sbr.rel (0) target = $region29
    $region28: #{tpu_custom_call.1} parent=1 // pred_region
      %s504 = ssub.s32 256, 256
      %505 = vsyncadd [#allocation4], %s504
      %s507 = sshll.u32 [#allocation8], 4
      %s508 = int_to_ptr.vmem [resolvable:$true] %s507
      %510 = dma.vmem_to_hbm [thread:$0]  %s508, 256, %s3, [#allocation4]
    $region29: #{tpu_custom_call.1} parent=1 // pred_fallthru
      _
    // Predicated region
    $region30: #{tpu_custom_call.1} parent=1 // pred_check
      _
    $region31: #{tpu_custom_call.1} parent=1 // pred_check_branch
      %512 = sbr.rel (0) target = $region33
    $region32: #{tpu_custom_call.1} parent=1 // pred_region
      %513 = dma.done [#allocation4], 256
    $region33: #{tpu_custom_call.1} parent=1 // pred_fallthru
      _
    %514 = vsyncpa [#allocation3], 1
    %515 = vsyncpa [#allocation6], 1
    %516 = vsyncpa [#allocation4], 1

</llo_original>
